<compile_context>
chip_gen: v6e
topology: v6e:2x2x1
jax: 0.10.0
libtpu: 0.0.40
codegen_flags: <defaults>
</compile_context>

<pallas_src>
import functools

import jax
import jax.numpy as jnp
from jax.experimental import pallas as pl
from jax.experimental.pallas import tpu as pltpu


def _round_up(x, m):
    return ((x + m - 1) // m) * m


def mlp_kernel(x_ref, w1_ref, b1_ref, w2_ref, b2_ref, w3t_ref, b3t_ref, o_ref):
    # bf16 cast in-kernel (VPU op, hidden under the DMA pipeline).
    x = x_ref[...].astype(jnp.bfloat16)
    # Linear(in_c, 128) + ReLU   (bf16 operands, f32 MXU accumulation)
    h1 = jnp.dot(x, w1_ref[...], preferred_element_type=jnp.float32)
    h1 = jnp.maximum(h1 + b1_ref[...], 0.0).astype(jnp.bfloat16)
    # Linear(128, 64) + ReLU
    h2 = jnp.dot(h1, w2_ref[...], preferred_element_type=jnp.float32)
    h2 = jnp.maximum(h2 + b2_ref[...], 0.0).astype(jnp.bfloat16)
    # Linear(64, out_c) computed transposed: (out_pad8, 64) . (tile_b, 64)^T
    # -> (out_pad8, tile_b): batch lands on the lane axis => lane-dense f32 store.
    out_t = jax.lax.dot_general(
        w3t_ref[...], h2,
        dimension_numbers=(((1,), (1,)), ((), ())),
        preferred_element_type=jnp.float32)
    o_ref[...] = out_t + b3t_ref[...]


def prepare_params(params):
    """One-time weight prep (outside the per-call path):
    bf16 casts, layer-3 transpose to (out_pad8, 64) with zero rows beyond out_c."""
    (w1, b1), (w2, b2), (w3, b3) = params
    out_c = int(w3.shape[1])
    out_pad = _round_up(out_c, 8)
    w3t = jnp.zeros((out_pad, w3.shape[0]), jnp.bfloat16)
    w3t = w3t.at[:out_c, :].set(w3.T.astype(jnp.bfloat16))
    b3t = jnp.zeros((out_pad, 1), jnp.float32).at[:out_c, 0].set(
        jnp.reshape(b3, (-1,)).astype(jnp.float32))
    prepared = (
        w1.astype(jnp.bfloat16), jnp.reshape(b1, (1, -1)).astype(jnp.float32),
        w2.astype(jnp.bfloat16), jnp.reshape(b2, (1, -1)).astype(jnp.float32),
        w3t, b3t,
    )
    return prepared, out_c


@functools.partial(jax.jit, static_argnames=("out_c", "tile_b"))
def net_forward(x, prepared, *, out_c, tile_b=1024):
    w1, b1, w2, b2, w3t, b3t = prepared
    batch, in_c = x.shape
    out_pad = w3t.shape[0]

    # Batch tiling: batch is the LANE axis of the transposed output, so any tile that
    # does not cover the full (padded) batch must be a multiple of 128.  Small batches
    # use one full-extent tile; larger batches get >= 2 grid programs so both v7x
    # TensorCores are used ("parallel" batch axis); tile is capped at tile_b (1024).
    b_pad8 = _round_up(batch, 8)
    if b_pad8 <= 512:
        tile = b_pad8
    else:
        tile = min(_round_up(tile_b, 128), _round_up(pl.cdiv(b_pad8, 2), 128))
    b_pad = _round_up(b_pad8, tile)
    if b_pad != batch:
        x = jnp.pad(x, ((0, b_pad - batch), (0, 0)))
    grid = (b_pad // tile,)

    flops = 2 * b_pad * (in_c * 128 + 128 * 64 + 64 * out_pad)
    bytes_accessed = (
        b_pad * in_c * 4                              # x (f32, cast in-kernel)
        + (w1.size + w2.size + w3t.size) * 2          # weights (bf16, resident)
        + (b1.size + b2.size + b3t.size) * 4          # biases (f32)
        + out_pad * b_pad * 4                         # transposed f32 output slab
    )

    const = lambda i: (0, 0)  # weights/biases stay VMEM-resident across the batch grid
    out_t = pl.pallas_call(
        mlp_kernel,
        out_shape=jax.ShapeDtypeStruct((out_pad, b_pad), jnp.float32),
        grid=grid,
        in_specs=[
            pl.BlockSpec((tile, in_c), lambda i: (i, 0)),   # x tile
            pl.BlockSpec(w1.shape, const),
            pl.BlockSpec(b1.shape, const),
            pl.BlockSpec(w2.shape, const),
            pl.BlockSpec(b2.shape, const),
            pl.BlockSpec(w3t.shape, const),
            pl.BlockSpec(b3t.shape, const),
        ],
        out_specs=pl.BlockSpec((out_pad, tile), lambda i: (0, i)),
        compiler_params=pltpu.CompilerParams(
            dimension_semantics=("parallel",)),
        cost_estimate=pl.CostEstimate(
            flops=flops, transcendentals=0, bytes_accessed=bytes_accessed),
    )(x, w1, b1, w2, b2, w3t, b3t)

    # Un-transpose in the wrapper, strip batch padding and the zero output rows.
    return out_t[:out_c, :batch].T


def init_params(key, in_c, out_c):
    """Mirror the PyTorch module init:
    - hidden layer weights ~ N(0, 0.1)
    - biases / last layer weight: PyTorch Linear default U(-1/sqrt(fan_in), 1/sqrt(fan_in))
    Weights stored as (in_features, out_features) for x @ W."""
    dims = [in_c, 128, 64, out_c]
    keys = jax.random.split(key, 6)
    params = []
    for i in range(3):
        fan_in, fan_out = dims[i], dims[i + 1]
        bound = 1.0 / jnp.sqrt(fan_in)
        if i < 2:
            w = 0.1 * jax.random.normal(keys[2 * i], (fan_in, fan_out), jnp.float32)
        else:
            w = jax.random.uniform(keys[2 * i], (fan_in, fan_out), jnp.float32,
                                   minval=-bound, maxval=bound)
        b = jax.random.uniform(keys[2 * i + 1], (1, fan_out), jnp.float32,
                               minval=-bound, maxval=bound)
        params.append((w, b))
    return params


def reference_forward(x, params):
    h = x
    for i, (w, b) in enumerate(params):
        h = h @ w + b
        if i < 2:
            h = jnp.maximum(h, 0.0)
    return h


if __name__ == "__main__":
    key = jax.random.PRNGKey(0)
    in_c, out_c, batch = 4, 2, 8
    kx, kp = jax.random.split(key)
    x = jax.random.normal(kx, (batch, in_c), jnp.float32)
    params = init_params(kp, in_c, out_c)
    prepared, out_c_prepared = prepare_params(params)

    out = net_forward(x, prepared, out_c=out_c_prepared)
    jax.block_until_ready(out)

    ref = reference_forward(x, params)  # f32 reference; kernel uses bf16 matmul inputs
    assert out.shape == (batch, out_c)
    assert jnp.allclose(out, ref, atol=3e-2, rtol=3e-2), (out, ref)

    # Also exercise a multi-tile batch grid (padding + >=2 programs) for correctness.
    x_big = jax.random.normal(kx, (1000, in_c), jnp.float32)
    out_big = net_forward(x_big, prepared, out_c=out_c_prepared)
    jax.block_until_ready(out_big)
    ref_big = reference_forward(x_big, params)
    assert out_big.shape == (1000, out_c)
    assert jnp.allclose(out_big, ref_big, atol=3e-2, rtol=3e-2)

    print("KERNEL_OK")
</pallas_src>

<mosaic_0001>
module attributes {stable_mosaic.version = 11 : i64} {
  func.func @mlp_kernel(%arg0: i32, %arg1: memref<8x4xf32, #tpu.memory_space<vmem>>, %arg2: memref<4x128xbf16, #tpu.memory_space<vmem>>, %arg3: memref<1x128xf32, #tpu.memory_space<vmem>>, %arg4: memref<128x64xbf16, #tpu.memory_space<vmem>>, %arg5: memref<1x64xf32, #tpu.memory_space<vmem>>, %arg6: memref<8x64xbf16, #tpu.memory_space<vmem>>, %arg7: memref<8x1xf32, #tpu.memory_space<vmem>>, %arg8: memref<8x8xf32, #tpu.memory_space<vmem>>) attributes {dimension_semantics = [#tpu.dimension_semantics<parallel>], iteration_bounds = array<i64: 1>, scalar_prefetch = 0 : i64, scratch_operands = 0 : i64, tpu.core_type = #tpu.core_type<tc>, window_params = [{transform_indices = @transform_0, window_bounds = array<i64: 8, 4>}, {pipeline_mode = #tpu.pipeline_mode<synchronous>, transform_indices = @transform_1, window_bounds = array<i64: 4, 128>}, {pipeline_mode = #tpu.pipeline_mode<synchronous>, transform_indices = @transform_2, window_bounds = array<i64: 1, 128>}, {pipeline_mode = #tpu.pipeline_mode<synchronous>, transform_indices = @transform_3, window_bounds = array<i64: 128, 64>}, {pipeline_mode = #tpu.pipeline_mode<synchronous>, transform_indices = @transform_4, window_bounds = array<i64: 1, 64>}, {pipeline_mode = #tpu.pipeline_mode<synchronous>, transform_indices = @transform_5, window_bounds = array<i64: 8, 64>}, {pipeline_mode = #tpu.pipeline_mode<synchronous>, transform_indices = @transform_6, window_bounds = array<i64: 8, 1>}, {transform_indices = @transform_7, window_bounds = array<i64: 8, 8>}]} {
    %c0 = arith.constant 0 : index
    %c0_0 = arith.constant 0 : index
    %0 = vector.load %arg1[%c0, %c0_0] : memref<8x4xf32, #tpu.memory_space<vmem>>, vector<8x4xf32>
    %1 = arith.truncf %0 : vector<8x4xf32> to vector<8x4xbf16>
    %c0_1 = arith.constant 0 : index
    %c0_2 = arith.constant 0 : index
    %2 = vector.load %arg2[%c0_1, %c0_2] : memref<4x128xbf16, #tpu.memory_space<vmem>>, vector<4x128xbf16>
    %cst = arith.constant dense<0.000000e+00> : vector<8x128xf32>
    %3 = tpu.matmul %1, %2, %cst {dimension_numbers = #tpu.dot_dimension_numbers<[1], [0], [0], [1], [0, 0, 1, 1], [], []>} : vector<8x4xbf16>, vector<4x128xbf16>, vector<8x128xf32> -> vector<8x128xf32>
    %c0_3 = arith.constant 0 : index
    %c0_4 = arith.constant 0 : index
    %4 = vector.load %arg3[%c0_3, %c0_4] : memref<1x128xf32, #tpu.memory_space<vmem>>, vector<1x128xf32>
    %5 = vector.broadcast %4 : vector<1x128xf32> to vector<8x128xf32>
    %6 = arith.addf %3, %5 : vector<8x128xf32>
    %cst_5 = arith.constant 0.000000e+00 : f32
    %7 = vector.broadcast %cst_5 : f32 to vector<8x128xf32>
    %8 = arith.maximumf %6, %7 : vector<8x128xf32>
    %9 = arith.truncf %8 : vector<8x128xf32> to vector<8x128xbf16>
    %c0_6 = arith.constant 0 : index
    %c0_7 = arith.constant 0 : index
    %10 = vector.load %arg4[%c0_6, %c0_7] : memref<128x64xbf16, #tpu.memory_space<vmem>>, vector<128x64xbf16>
    %cst_8 = arith.constant dense<0.000000e+00> : vector<8x64xf32>
    %11 = tpu.matmul %9, %10, %cst_8 {dimension_numbers = #tpu.dot_dimension_numbers<[1], [0], [0], [1], [0, 0, 1, 1], [], []>} : vector<8x128xbf16>, vector<128x64xbf16>, vector<8x64xf32> -> vector<8x64xf32>
    %c0_9 = arith.constant 0 : index
    %c0_10 = arith.constant 0 : index
    %12 = vector.load %arg5[%c0_9, %c0_10] : memref<1x64xf32, #tpu.memory_space<vmem>>, vector<1x64xf32>
    %13 = vector.broadcast %12 : vector<1x64xf32> to vector<8x64xf32>
    %14 = arith.addf %11, %13 : vector<8x64xf32>
    %cst_11 = arith.constant 0.000000e+00 : f32
    %15 = vector.broadcast %cst_11 : f32 to vector<8x64xf32>
    %16 = arith.maximumf %14, %15 : vector<8x64xf32>
    %17 = arith.truncf %16 : vector<8x64xf32> to vector<8x64xbf16>
    %c0_12 = arith.constant 0 : index
    %c0_13 = arith.constant 0 : index
    %18 = vector.load %arg6[%c0_12, %c0_13] : memref<8x64xbf16, #tpu.memory_space<vmem>>, vector<8x64xbf16>
    %cst_14 = arith.constant dense<0.000000e+00> : vector<8x8xf32>
    %19 = tpu.matmul %18, %17, %cst_14 {dimension_numbers = #tpu.dot_dimension_numbers<[1], [1], [0], [0], [0, 0, 1, 0], [], []>} : vector<8x64xbf16>, vector<8x64xbf16>, vector<8x8xf32> -> vector<8x8xf32>
    %c0_15 = arith.constant 0 : index
    %c0_16 = arith.constant 0 : index
    %20 = vector.load %arg7[%c0_15, %c0_16] : memref<8x1xf32, #tpu.memory_space<vmem>>, vector<8x1xf32>
    %21 = vector.broadcast %20 : vector<8x1xf32> to vector<8x8xf32>
    %22 = arith.addf %19, %21 : vector<8x8xf32>
    %c0_17 = arith.constant 0 : index
    %c0_18 = arith.constant 0 : index
    %23 = vector.load %arg8[%c0_17, %c0_18] : memref<8x8xf32, #tpu.memory_space<vmem>>, vector<8x8xf32>
    tpu.vector_store %arg8[%c0_17, %c0_18], %22 {strides = array<i32>} : memref<8x8xf32, #tpu.memory_space<vmem>>, vector<8x8xf32>,
    return
  }
  func.func @transform_0(%arg0: i32) -> (i32, i32) {
    %c0_i32 = arith.constant 0 : i32
    %c0_i32_0 = arith.constant 0 : i32
    return %arg0, %c0_i32 : i32, i32
  }
  func.func @transform_1(%arg0: i32) -> (i32, i32) {
    %c0_i32 = arith.constant 0 : i32
    %c0_i32_0 = arith.constant 0 : i32
    %c0_i32_1 = arith.constant 0 : i32
    return %c0_i32, %c0_i32_0 : i32, i32
  }
  func.func @transform_2(%arg0: i32) -> (i32, i32) {
    %c0_i32 = arith.constant 0 : i32
    %c0_i32_0 = arith.constant 0 : i32
    %c0_i32_1 = arith.constant 0 : i32
    return %c0_i32, %c0_i32_0 : i32, i32
  }
  func.func @transform_3(%arg0: i32) -> (i32, i32) {
    %c0_i32 = arith.constant 0 : i32
    %c0_i32_0 = arith.constant 0 : i32
    %c0_i32_1 = arith.constant 0 : i32
    return %c0_i32, %c0_i32_0 : i32, i32
  }
  func.func @transform_4(%arg0: i32) -> (i32, i32) {
    %c0_i32 = arith.constant 0 : i32
    %c0_i32_0 = arith.constant 0 : i32
    %c0_i32_1 = arith.constant 0 : i32
    return %c0_i32, %c0_i32_0 : i32, i32
  }
  func.func @transform_5(%arg0: i32) -> (i32, i32) {
    %c0_i32 = arith.constant 0 : i32
    %c0_i32_0 = arith.constant 0 : i32
    %c0_i32_1 = arith.constant 0 : i32
    return %c0_i32, %c0_i32_0 : i32, i32
  }
  func.func @transform_6(%arg0: i32) -> (i32, i32) {
    %c0_i32 = arith.constant 0 : i32
    %c0_i32_0 = arith.constant 0 : i32
    %c0_i32_1 = arith.constant 0 : i32
    return %c0_i32, %c0_i32_0 : i32, i32
  }
  func.func @transform_7(%arg0: i32) -> (i32, i32) {
    %c0_i32 = arith.constant 0 : i32
    %c0_i32_0 = arith.constant 0 : i32
    return %c0_i32, %arg0 : i32, i32
  }
}

</mosaic_0001>

<llo_original>
// kernel: net_forward.1
$region0: #{net_forward.1}
  #allocation0 [shape = 'u32[]', space=smem, size = 0x4, offset = 0x4, fixed_abs, tag = 'smem constant byte address 0x4 - core index']
  #allocation1 [shape = 'u32[144,128]{1,0:T(1,128)}', space=vmem, size = 0x12000, scoped, tag = 'internal scratch']
  %s0 = inlined_call_operand.vmem [shape: f32[8,4], index: 0, kind: input, shape index: {}]
  %s1 = inlined_call_operand.vmem [shape: bf16[4,128], index: 1, kind: input, shape index: {}]
  %s2 = inlined_call_operand.vmem [shape: f32[1,128], index: 2, kind: input, shape index: {}]
  %s3 = inlined_call_operand.vmem [shape: bf16[128,64], index: 3, kind: input, shape index: {}]
  %s4 = inlined_call_operand.vmem [shape: f32[1,64], index: 4, kind: input, shape index: {}]
  %s5 = inlined_call_operand.vmem [shape: bf16[8,64], index: 5, kind: input, shape index: {}]
  %s6 = inlined_call_operand.vmem [shape: f32[8,1], index: 6, kind: input, shape index: {}]
  %s7 = inlined_call_operand.vmem [shape: f32[8,8], index: 7, kind: output, shape index: {}]
  %s8 = sld [smem:[#allocation0]]
  $region38: #{net_forward.1} parent=0
    _
  %s10 = ssub.s32 1, %s8
  %s11 = scalar_select 0, %s10, %s8
  // Predicated region
  $region2: #{net_forward.1} parent=0 // pred_check
    _
  $region3: #{net_forward.1} parent=0 // pred_check_branch
    %13 = sbr.rel (0) target = $region5
  $region4: #{net_forward.1} parent=0 // pred_region
    _
  $region5: #{net_forward.1} parent=0 // pred_fallthru
    _
  // Predicated region
  $region6: #{net_forward.1} parent=0 // pred_check
    _
  $region7: #{net_forward.1} parent=0 // pred_check_branch
    %15 = sbr.rel (0) target = $region9
  $region8: #{net_forward.1} parent=0 // pred_region
    _
  $region9: #{net_forward.1} parent=0 // pred_fallthru
    _
  // Predicated region
  $region10: #{net_forward.1} parent=0 // pred_check
    _
  $region11: #{net_forward.1} parent=0 // pred_check_branch
    %17 = sbr.rel (0) target = $region13
  $region12: #{net_forward.1} parent=0 // pred_region
    _
  $region13: #{net_forward.1} parent=0 // pred_fallthru
    _
  // Predicated region
  $region14: #{net_forward.1} parent=0 // pred_check
    _
  $region15: #{net_forward.1} parent=0 // pred_check_branch
    %19 = sbr.rel (0) target = $region17
  $region16: #{net_forward.1} parent=0 // pred_region
    _
  $region17: #{net_forward.1} parent=0 // pred_fallthru
    _
  // Predicated region
  $region18: #{net_forward.1} parent=0 // pred_check
    _
  $region19: #{net_forward.1} parent=0 // pred_check_branch
    %21 = sbr.rel (0) target = $region21
  $region20: #{net_forward.1} parent=0 // pred_region
    _
  $region21: #{net_forward.1} parent=0 // pred_fallthru
    _
  // Predicated region
  $region22: #{net_forward.1} parent=0 // pred_check
    _
  $region23: #{net_forward.1} parent=0 // pred_check_branch
    %23 = sbr.rel (0) target = $region25
  $region24: #{net_forward.1} parent=0 // pred_region
    _
  $region25: #{net_forward.1} parent=0 // pred_fallthru
    _
  // Predicated region
  $region26: #{net_forward.1} parent=0 // pred_check
    _
  $region27: #{net_forward.1} parent=0 // pred_check_branch
    %25 = sbr.rel (0) target = $region29
  $region28: #{net_forward.1} parent=0 // pred_region
    _
  $region29: #{net_forward.1} parent=0 // pred_fallthru
    _
  %v27 = vld [vmem:[%s0] sm:$0xff]
  %v28 = vpack.c.bf16 %v27, %v27
  %v29 = vld [vmem:[%s1] sm:$0x3]
  %v30 = vld [vmem:[%s2] sm:$0x1]
  %v32 = vlaneseq
  %v33 = vshrl.u32 %v32, 7
  %v34 = vsub.s32 0, %v33
  %v35 = vrot.slane %v30, %v34
  %vm37 = vcmask 31744
  %v39 = vsel %vm37, %v28, 0
  %vm41 = vcmask 1041408
  %v43 = vsel %vm41, %v29, 0
  %45 = vmatprep.subr.bf16.mxu0 0
  %46 = vmatpush1.bf16.msra.mxu0 0
  %47 = vmatprep.subr.bf16.mxu0 0
  %48 = vmatpush1.bf16.msra.mxu0 0
  %49 = vmatprep.subr.bf16.mxu0 0
  %50 = vmatpush1.bf16.msra.mxu0 0
  %51 = vmatprep.subr.bf16.mxu0 0
  %52 = vmatpush1.bf16.msra.mxu0 0
  %53 = vmatprep.subr.bf16.mxu0 0
  %54 = vmatpush1.bf16.msra.mxu0 0
  %55 = vmatprep.subr.bf16.mxu0 0
  %56 = vmatpush1.bf16.msra.mxu0 0
  %57 = vmatprep.subr.bf16.mxu0 0
  %58 = vmatpush1.bf16.msra.mxu0 0
  %59 = vmatprep.subr.bf16.mxu0 0
  %60 = vmatpush1.bf16.msra.mxu0 %v43
  %61 = vmatprep.subr.bf16.mxu0 0
  %62 = vmatpush2.bf16.msra.mxu0 0
  %63 = vmatprep.subr.bf16.mxu0 0
  %64 = vmatpush2.bf16.msra.mxu0 0
  %65 = vmatprep.subr.bf16.mxu0 0
  %66 = vmatpush2.bf16.msra.mxu0 0
  %67 = vmatprep.subr.bf16.mxu0 0
  %68 = vmatpush2.bf16.msra.mxu0 0
  %69 = vmatprep.subr.bf16.mxu0 0
  %70 = vmatpush2.bf16.msra.mxu0 0
  %71 = vmatprep.subr.bf16.mxu0 0
  %72 = vmatpush2.bf16.msra.mxu0 0
  %73 = vmatprep.subr.bf16.mxu0 0
  %74 = vmatpush2.bf16.msra.mxu0 0
  %75 = vmatprep.subr.bf16.mxu0 0
  %76 = vmatpush2.bf16.msra.mxu0 0
  %77 = vmatprep.mubr.bf16.mxu0 0
  %78 = vmatmul.mubr.bf16.gmra.mxu0 %v39
  %v79 = vpop.f32.mrf.mxu0
  %v80 = vadd.f32 %v35, %v79
  %v81 = vpop.f32.mrf.mxu0
  %v82 = vpop.f32.mrf.mxu0
  %v83 = vpop.f32.mrf.mxu0
  %84 = vdwg.mxu0
  %v85 = vmax.f32 %v80, 0.0
  %v86 = vpack.c.bf16 %v85, %v85
  %v87 = vld [vmem:[%s3] sm:$0xf]
  %v88 = vld [vmem:[%s3 + $0x4] sm:$0xf]
  %v89 = vld [vmem:[%s3 + $0x8] sm:$0xf]
  %v90 = vld [vmem:[%s3 + $0xc] sm:$0xf]
  %v91 = vld [vmem:[%s3 + $0x10] sm:$0xf]
  %v92 = vld [vmem:[%s3 + $0x14] sm:$0xf]
  %v93 = vld [vmem:[%s3 + $0x18] sm:$0xf]
  %v94 = vld [vmem:[%s3 + $0x1c] sm:$0xf]
  %v95 = vld [vmem:[%s3 + $0x20] sm:$0xf]
  %v96 = vld [vmem:[%s3 + $0x24] sm:$0xf]
  %v97 = vld [vmem:[%s3 + $0x28] sm:$0xf]
  %v98 = vld [vmem:[%s3 + $0x2c] sm:$0xf]
  %v99 = vld [vmem:[%s3 + $0x30] sm:$0xf]
  %v100 = vld [vmem:[%s3 + $0x34] sm:$0xf]
  %v101 = vld [vmem:[%s3 + $0x38] sm:$0xf]
  %v102 = vld [vmem:[%s3 + $0x3c] sm:$0xf]
  %v103 = vld [vmem:[%s4] sm:$0x1]
  %v105 = vlaneseq
  %v106 = vshrl.u32 %v105, 7
  %v107 = vsub.s32 0, %v106
  %v108 = vrot.slane %v103, %v107
  %v126 = vunpack.c.l.b16 %v87
  %v127 = vunpack.c.l.b16 %v88
  %v128 = vunpack.c.l.b16 %v89
  %v129 = vunpack.c.l.b16 %v90
  %v130 = vunpack.c.l.b16 %v91
  %v131 = vunpack.c.l.b16 %v92
  %v132 = vunpack.c.l.b16 %v93
  %v133 = vunpack.c.l.b16 %v94
  %v134 = vunpack.c.l.b16 %v95
  %v135 = vunpack.c.l.b16 %v96
  %v136 = vunpack.c.l.b16 %v97
  %v137 = vunpack.c.l.b16 %v98
  %v138 = vunpack.c.l.b16 %v99
  %v139 = vunpack.c.l.b16 %v100
  %v140 = vunpack.c.l.b16 %v101
  %v141 = vunpack.c.l.b16 %v102
  %v142 = vpack.c.b16 %v127, %v126
  %v143 = vpack.c.b16 %v129, %v128
  %v144 = vpack.c.b16 %v131, %v130
  %v145 = vpack.c.b16 %v133, %v132
  %v146 = vpack.c.b16 %v135, %v134
  %v147 = vpack.c.b16 %v137, %v136
  %v148 = vpack.c.b16 %v139, %v138
  %v149 = vpack.c.b16 %v141, %v140
  %158 = vmatprep.subr.bf16.mxu0 0
  %159 = vmatpush1.bf16.msra.mxu0 %v149
  %160 = vmatprep.subr.bf16.mxu0 0
  %161 = vmatpush1.bf16.msra.mxu0 %v148
  %162 = vmatprep.subr.bf16.mxu0 0
  %163 = vmatpush1.bf16.msra.mxu0 %v147
  %164 = vmatprep.subr.bf16.mxu0 0
  %165 = vmatpush1.bf16.msra.mxu0 %v146
  %166 = vmatprep.subr.bf16.mxu0 0
  %167 = vmatpush1.bf16.msra.mxu0 %v145
  %168 = vmatprep.subr.bf16.mxu0 0
  %169 = vmatpush1.bf16.msra.mxu0 %v144
  %170 = vmatprep.subr.bf16.mxu0 0
  %171 = vmatpush1.bf16.msra.mxu0 %v143
  %172 = vmatprep.subr.bf16.mxu0 0
  %173 = vmatpush1.bf16.msra.mxu0 %v142
  %174 = vmatprep.subr.bf16.mxu0 0
  %175 = vmatpush2.bf16.msra.mxu0 0
  %176 = vmatprep.subr.bf16.mxu0 0
  %177 = vmatpush2.bf16.msra.mxu0 0
  %178 = vmatprep.subr.bf16.mxu0 0
  %179 = vmatpush2.bf16.msra.mxu0 0
  %180 = vmatprep.subr.bf16.mxu0 0
  %181 = vmatpush2.bf16.msra.mxu0 0
  %182 = vmatprep.subr.bf16.mxu0 0
  %183 = vmatpush2.bf16.msra.mxu0 0
  %184 = vmatprep.subr.bf16.mxu0 0
  %185 = vmatpush2.bf16.msra.mxu0 0
  %186 = vmatprep.subr.bf16.mxu0 0
  %187 = vmatpush2.bf16.msra.mxu0 0
  %188 = vmatprep.subr.bf16.mxu0 0
  %189 = vmatpush2.bf16.msra.mxu0 0
  %190 = vmatprep.mubr.bf16.mxu0 0
  %191 = vmatmul.mubr.bf16.gmra.mxu0 %v86
  %v192 = vpop.f32.mrf.mxu0
  %v193 = vadd.f32 %v108, %v192
  %v194 = vpop.f32.mrf.mxu0
  %v195 = vpop.f32.mrf.mxu0
  %v196 = vpop.f32.mrf.mxu0
  %197 = vdwg.mxu0
  %v198 = vmax.f32 %v193, 0.0
  %v199 = vpack.c.bf16 %v198, %v198
  %v200 = vld [vmem:[%s5] sm:$0xf]
  %v201 = vld [vmem:[%s6] sm:$0xff]
  %203 = vset.pattern.permute.xlu0 0
  %204 = vperm.xlu0 %203, %v201
  %v205 = vpop.permute.xlu0 %204
  %vm207 = vcmask 523264
  %v209 = vsel %vm207, %v200, 0
  %v212 = vsel %vm207, %v199, 0
  %214 = vmatprep.subr.bf16.mxu0 0
  %215 = vmatpush1.bf16.xpose.msra.mxu0 0
  %216 = vmatprep.subr.bf16.mxu0 0
  %217 = vmatpush1.bf16.xpose.msra.mxu0 0
  %218 = vmatprep.subr.bf16.mxu0 0
  %219 = vmatpush1.bf16.xpose.msra.mxu0 0
  %220 = vmatprep.subr.bf16.mxu0 0
  %221 = vmatpush1.bf16.xpose.msra.mxu0 0
  %222 = vmatprep.subr.bf16.mxu0 0
  %223 = vmatpush1.bf16.xpose.msra.mxu0 0
  %224 = vmatprep.subr.bf16.mxu0 0
  %225 = vmatpush1.bf16.xpose.msra.mxu0 0
  %226 = vmatprep.subr.bf16.mxu0 0
  %227 = vmatpush1.bf16.xpose.msra.mxu0 0
  %228 = vmatprep.subr.bf16.mxu0 0
  %229 = vmatpush1.bf16.xpose.msra.mxu0 %v212
  %230 = vmatprep.subr.bf16.mxu0 0
  %231 = vmatpush2.bf16.xpose.msra.mxu0 0
  %232 = vmatprep.subr.bf16.mxu0 0
  %233 = vmatpush2.bf16.xpose.msra.mxu0 0
  %234 = vmatprep.subr.bf16.mxu0 0
  %235 = vmatpush2.bf16.xpose.msra.mxu0 0
  %236 = vmatprep.subr.bf16.mxu0 0
  %237 = vmatpush2.bf16.xpose.msra.mxu0 0
  %238 = vmatprep.subr.bf16.mxu0 0
  %239 = vmatpush2.bf16.xpose.msra.mxu0 0
  %240 = vmatprep.subr.bf16.mxu0 0
  %241 = vmatpush2.bf16.xpose.msra.mxu0 0
  %242 = vmatprep.subr.bf16.mxu0 0
  %243 = vmatpush2.bf16.xpose.msra.mxu0 0
  %244 = vmatprep.subr.bf16.mxu0 0
  %245 = vmatpush2.bf16.xpose.msra.mxu0 0
  %246 = vmatprep.mubr.bf16.mxu0 0
  %247 = vmatmul.mubr.bf16.gmra.mxu0 %v209
  %v248 = vpop.f32.mrf.mxu0
  %v249 = vadd.f32 %v205, %v248
  %v250 = vpop.f32.mrf.mxu0
  %v251 = vpop.f32.mrf.mxu0
  %v252 = vpop.f32.mrf.mxu0
  %253 = vdwg.mxu0
  %vm254 = vcmask 64512
  %255 = vst.msk [vmem:[%s7] sm:$0xff] %vm254, %v249
  // Predicated region
  $region30: #{net_forward.1} parent=0 // pred_check
    _
  $region31: #{net_forward.1} parent=0 // pred_check_branch
    %257 = sbr.rel (0) target = $region33
  $region32: #{net_forward.1} parent=0 // pred_region
    _
  $region33: #{net_forward.1} parent=0 // pred_fallthru
    _
  // Predicated region
  $region34: #{net_forward.1} parent=0 // pred_check
    _
  $region35: #{net_forward.1} parent=0 // pred_check_branch
    %259 = sbr.rel (0) target = $region37
  $region36: #{net_forward.1} parent=0 // pred_region
    _
  $region37: #{net_forward.1} parent=0 // pred_fallthru
    _

</llo_original>
